<compile_context>
chip_gen: v5e
topology: v5e:2x2
jax: 0.10.0
libtpu: 0.0.40
codegen_flags: <defaults>
</compile_context>

<pallas_src>
import functools

import jax
import jax.numpy as jnp
from jax.experimental import pallas as pl
from jax.experimental.pallas import tpu as pltpu

HIDDEN = 256  # fixed by the module definition
LANE = 128    # TPU lane width


def _round_up(n, m):
    return ((n + m - 1) // m) * m


def _dqn_kernel(x_ref, w1_ref, b1_ref, w2_ref, b2_ref, w3_ref, b3_ref, o_ref):
    cdt = w2_ref.dtype  # compute dtype for MXU inputs (bf16 or f32)
    # x arrives unpadded/f32; cast to the compute dtype in VMEM (no extra HBM pass).
    x = x_ref[...].astype(cdt)
    # Layer 1: Linear + ReLU (f32 accumulate, bias/ReLU in f32 on the VPU).
    h1 = jnp.dot(x, w1_ref[...], preferred_element_type=jnp.float32)
    h1 = jnp.maximum(h1 + b1_ref[...], 0.0).astype(cdt)
    # Layer 2: Linear + ReLU.
    h2 = jnp.dot(h1, w2_ref[...], preferred_element_type=jnp.float32)
    h2 = jnp.maximum(h2 + b2_ref[...], 0.0).astype(cdt)
    # Layer 3: Linear (no activation).
    out = jnp.dot(h2, w3_ref[...], preferred_element_type=jnp.float32) + b3_ref[...]
    o_ref[...] = out.astype(o_ref.dtype)


def prepare_params(params, compute_dtype=jnp.bfloat16):
    """One-time prep: cast weights to the compute dtype and pad the output feature
    dim to a multiple of 128 lanes (lane-dense, unmasked output stores).
    Returns (prepared_params, output_dim)."""
    cd = compute_dtype
    d_out = params["w3"].shape[1]
    d_out_p = _round_up(d_out, LANE)
    prep = {
        "w1": params["w1"].astype(cd),                      # (d_in, 256), unpadded K
        "b1": params["b1"].reshape(1, -1).astype(jnp.float32),
        "w2": params["w2"].astype(cd),                      # (256, 256)
        "b2": params["b2"].reshape(1, -1).astype(jnp.float32),
        "w3": jnp.zeros((HIDDEN, d_out_p), cd).at[:, :d_out].set(
            params["w3"].astype(cd)),
        "b3": jnp.zeros((1, d_out_p), jnp.float32).at[:, :d_out].set(
            params["b3"].reshape(1, -1).astype(jnp.float32)),
    }
    return prep, d_out


def _pick_batch_tile(batch):
    """Batch-tile heuristic: one step for small batches; >=2 even 8-aligned tiles
    (both v7x TensorCores) capped at 1024 rows (amortizes per-step overhead on
    single-TC v5e/v6e)."""
    b8 = _round_up(max(batch, 1), 8)
    if b8 <= 128:
        return b8
    nsteps = max(2, pl.cdiv(b8, 1024))
    return _round_up(pl.cdiv(b8, nsteps), 8)


@functools.partial(jax.jit, static_argnames=("out_dim", "batch_tile"))
def dqn_forward(x, prep, out_dim, batch_tile=None):
    """x: (B, input_dim) f32.  prep: output of prepare_params().  Returns
    (B, out_dim) in the compute dtype (f32 if prep was built with f32)."""
    B, d_in = x.shape
    d_out_p = prep["w3"].shape[1]
    out_dtype = prep["w2"].dtype  # output in the compute dtype (halves writeback)

    if batch_tile is None:
        batch_tile = _pick_batch_tile(B)
    batch_tile = max(8, _round_up(batch_tile, 8))
    B_p = _round_up(B, batch_tile)
    # Only the (rare) batch remainder is padded; features stay unpadded.
    xp = x if B_p == B else jnp.pad(x, ((0, B_p - B), (0, 0)))

    grid = (B_p // batch_tile,)
    row = lambda i: (i, 0)   # batch-tiled arrays
    full = lambda i: (0, 0)  # weights/biases: single block, VMEM-resident across grid

    flops = 2 * B_p * (d_in * HIDDEN + HIDDEN * HIDDEN + HIDDEN * d_out_p)
    bytes_accessed = (
        B_p * d_in * xp.dtype.itemsize
        + sum(int(v.size) * v.dtype.itemsize for v in prep.values())
        + B_p * d_out_p * jnp.dtype(out_dtype).itemsize)

    out = pl.pallas_call(
        _dqn_kernel,
        out_shape=jax.ShapeDtypeStruct((B_p, d_out_p), out_dtype),
        grid_spec=pltpu.PrefetchScalarGridSpec(
            num_scalar_prefetch=0,
            grid=grid,
            in_specs=[
                pl.BlockSpec((batch_tile, d_in), row),   # x (unpadded features)
                pl.BlockSpec((d_in, HIDDEN), full),      # w1
                pl.BlockSpec((1, HIDDEN), full),         # b1
                pl.BlockSpec((HIDDEN, HIDDEN), full),    # w2
                pl.BlockSpec((1, HIDDEN), full),         # b2
                pl.BlockSpec((HIDDEN, d_out_p), full),   # w3
                pl.BlockSpec((1, d_out_p), full),        # b3
            ],
            out_specs=pl.BlockSpec((batch_tile, d_out_p), row),
        ),
        compiler_params=pltpu.CompilerParams(
            dimension_semantics=("parallel",)),
        cost_estimate=pl.CostEstimate(
            flops=int(flops),
            transcendentals=0,
            bytes_accessed=int(bytes_accessed)),
    )(xp, prep["w1"], prep["b1"], prep["w2"], prep["b2"], prep["w3"], prep["b3"])

    return out[:B, :out_dim]


def init_dqn_params(key, input_dim, output_dim, dtype=jnp.float32):
    """Deterministic init mimicking nn.Linear default: U(-1/sqrt(fan_in), 1/sqrt(fan_in)).
    Weights are stored transposed relative to PyTorch, i.e. shape (in, out)."""
    ks = jax.random.split(key, 6)

    def linear(kw, kb, fan_in, fan_out):
        bound = 1.0 / jnp.sqrt(jnp.float32(fan_in))
        w = jax.random.uniform(kw, (fan_in, fan_out), dtype, -bound, bound)
        b = jax.random.uniform(kb, (1, fan_out), dtype, -bound, bound)
        return w, b

    w1, b1 = linear(ks[0], ks[1], input_dim, HIDDEN)
    w2, b2 = linear(ks[2], ks[3], HIDDEN, HIDDEN)
    w3, b3 = linear(ks[4], ks[5], HIDDEN, output_dim)
    return {"w1": w1, "b1": b1, "w2": w2, "b2": b2, "w3": w3, "b3": b3}


def dqn_reference(x, p):
    """Pure-JAX f32 reference (matches the PyTorch module)."""
    h1 = jnp.maximum(x @ p["w1"] + p["b1"], 0.0)
    h2 = jnp.maximum(h1 @ p["w2"] + p["b2"], 0.0)
    return h2 @ p["w3"] + p["b3"]


def dqn_reference_bf16(x, p):
    """Reference emulating the kernel's bf16-inputs / f32-accumulate path."""
    cd = jnp.bfloat16
    h1 = jnp.dot(x.astype(cd), p["w1"].astype(cd), preferred_element_type=jnp.float32)
    h1 = jnp.maximum(h1 + p["b1"], 0.0).astype(cd)
    h2 = jnp.dot(h1, p["w2"].astype(cd), preferred_element_type=jnp.float32)
    h2 = jnp.maximum(h2 + p["b2"], 0.0).astype(cd)
    return jnp.dot(h2, p["w3"].astype(cd), preferred_element_type=jnp.float32) + p["b3"]


if __name__ == "__main__":
    # Battleship: 10x10 board flattened -> input_dim = output_dim = 100
    # (deliberately NOT a multiple of 128 to exercise the unaligned-K / padded-N path).
    INPUT_DIM, OUTPUT_DIM = 100, 100

    key = jax.random.PRNGKey(0)
    kx, kp, kx2 = jax.random.split(key, 3)
    params = init_dqn_params(kp, INPUT_DIM, OUTPUT_DIM)

    # One-time weight prep (hoisted out of the forward pass).
    prep_f32, out_dim = prepare_params(params, compute_dtype=jnp.float32)
    prep_bf16, _ = prepare_params(params, compute_dtype=jnp.bfloat16)

    # 1) Tiny selfplay-style batch, f32 compute path (exact vs reference).
    x_small = jax.random.normal(kx, (8, INPUT_DIM), jnp.float32)
    out_f32 = jax.block_until_ready(dqn_forward(x_small, prep_f32, out_dim))
    ref_f32 = dqn_reference(x_small, params)
    assert out_f32.shape == (8, OUTPUT_DIM) and out_f32.dtype == jnp.float32
    assert jnp.allclose(out_f32, ref_f32, atol=1e-4, rtol=1e-4), "f32 mismatch"

    # 2) Same batch, default bf16 compute path (bf16 inputs + bf16 output).
    out_bf16 = jax.block_until_ready(dqn_forward(x_small, prep_bf16, out_dim))
    ref_bf16 = dqn_reference_bf16(x_small, params)
    assert out_bf16.dtype == jnp.bfloat16
    assert jnp.allclose(out_bf16.astype(jnp.float32), ref_bf16,
                        atol=3e-2, rtol=3e-2), "bf16 mismatch"

    # 3) Larger batch exercising the multi-tile "parallel" grid (2 even 152-row tiles).
    x_big = jax.random.normal(kx2, (300, INPUT_DIM), jnp.float32)
    out_big = jax.block_until_ready(dqn_forward(x_big, prep_bf16, out_dim))
    ref_big = dqn_reference_bf16(x_big, params)
    assert out_big.shape == (300, OUTPUT_DIM)
    assert jnp.allclose(out_big.astype(jnp.float32), ref_big,
                        atol=3e-2, rtol=3e-2), "bf16 batch mismatch"

    print("KERNEL_OK")
</pallas_src>

<mosaic_0001>
module attributes {stable_mosaic.version = 11 : i64} {
  func.func @_dqn_kernel(%arg0: i32, %arg1: memref<8x100xf32, #tpu.memory_space<vmem>>, %arg2: memref<100x256xf32, #tpu.memory_space<vmem>>, %arg3: memref<1x256xf32, #tpu.memory_space<vmem>>, %arg4: memref<256x256xf32, #tpu.memory_space<vmem>>, %arg5: memref<1x256xf32, #tpu.memory_space<vmem>>, %arg6: memref<256x128xf32, #tpu.memory_space<vmem>>, %arg7: memref<1x128xf32, #tpu.memory_space<vmem>>, %arg8: memref<8x128xf32, #tpu.memory_space<vmem>>) attributes {dimension_semantics = [#tpu.dimension_semantics<parallel>], iteration_bounds = array<i64: 1>, scalar_prefetch = 0 : i64, scratch_operands = 0 : i64, tpu.core_type = #tpu.core_type<tc>, window_params = [{transform_indices = @transform_0, window_bounds = array<i64: 8, 100>}, {pipeline_mode = #tpu.pipeline_mode<synchronous>, transform_indices = @transform_1, window_bounds = array<i64: 100, 256>}, {pipeline_mode = #tpu.pipeline_mode<synchronous>, transform_indices = @transform_2, window_bounds = array<i64: 1, 256>}, {pipeline_mode = #tpu.pipeline_mode<synchronous>, transform_indices = @transform_3, window_bounds = array<i64: 256, 256>}, {pipeline_mode = #tpu.pipeline_mode<synchronous>, transform_indices = @transform_4, window_bounds = array<i64: 1, 256>}, {pipeline_mode = #tpu.pipeline_mode<synchronous>, transform_indices = @transform_5, window_bounds = array<i64: 256, 128>}, {pipeline_mode = #tpu.pipeline_mode<synchronous>, transform_indices = @transform_6, window_bounds = array<i64: 1, 128>}, {transform_indices = @transform_7, window_bounds = array<i64: 8, 128>}]} {
    %c0 = arith.constant 0 : index
    %c0_0 = arith.constant 0 : index
    %0 = vector.load %arg1[%c0, %c0_0] : memref<8x100xf32, #tpu.memory_space<vmem>>, vector<8x100xf32>
    %c0_1 = arith.constant 0 : index
    %c0_2 = arith.constant 0 : index
    %1 = vector.load %arg2[%c0_1, %c0_2] : memref<100x256xf32, #tpu.memory_space<vmem>>, vector<100x256xf32>
    %cst = arith.constant dense<0.000000e+00> : vector<8x256xf32>
    %2 = tpu.matmul %0, %1, %cst {dimension_numbers = #tpu.dot_dimension_numbers<[1], [0], [0], [1], [0, 0, 1, 1], [], []>} : vector<8x100xf32>, vector<100x256xf32>, vector<8x256xf32> -> vector<8x256xf32>
    %c0_3 = arith.constant 0 : index
    %c0_4 = arith.constant 0 : index
    %3 = vector.load %arg3[%c0_3, %c0_4] : memref<1x256xf32, #tpu.memory_space<vmem>>, vector<1x256xf32>
    %4 = vector.broadcast %3 : vector<1x256xf32> to vector<8x256xf32>
    %5 = arith.addf %2, %4 : vector<8x256xf32>
    %cst_5 = arith.constant 0.000000e+00 : f32
    %6 = vector.broadcast %cst_5 : f32 to vector<8x256xf32>
    %7 = arith.maximumf %5, %6 : vector<8x256xf32>
    %c0_6 = arith.constant 0 : index
    %c0_7 = arith.constant 0 : index
    %8 = vector.load %arg4[%c0_6, %c0_7] : memref<256x256xf32, #tpu.memory_space<vmem>>, vector<256x256xf32>
    %cst_8 = arith.constant dense<0.000000e+00> : vector<8x256xf32>
    %9 = tpu.matmul %7, %8, %cst_8 {dimension_numbers = #tpu.dot_dimension_numbers<[1], [0], [0], [1], [0, 0, 1, 1], [], []>} : vector<8x256xf32>, vector<256x256xf32>, vector<8x256xf32> -> vector<8x256xf32>
    %c0_9 = arith.constant 0 : index
    %c0_10 = arith.constant 0 : index
    %10 = vector.load %arg5[%c0_9, %c0_10] : memref<1x256xf32, #tpu.memory_space<vmem>>, vector<1x256xf32>
    %11 = vector.broadcast %10 : vector<1x256xf32> to vector<8x256xf32>
    %12 = arith.addf %9, %11 : vector<8x256xf32>
    %cst_11 = arith.constant 0.000000e+00 : f32
    %13 = vector.broadcast %cst_11 : f32 to vector<8x256xf32>
    %14 = arith.maximumf %12, %13 : vector<8x256xf32>
    %c0_12 = arith.constant 0 : index
    %c0_13 = arith.constant 0 : index
    %15 = vector.load %arg6[%c0_12, %c0_13] : memref<256x128xf32, #tpu.memory_space<vmem>>, vector<256x128xf32>
    %cst_14 = arith.constant dense<0.000000e+00> : vector<8x128xf32>
    %16 = tpu.matmul %14, %15, %cst_14 {dimension_numbers = #tpu.dot_dimension_numbers<[1], [0], [0], [1], [0, 0, 1, 1], [], []>} : vector<8x256xf32>, vector<256x128xf32>, vector<8x128xf32> -> vector<8x128xf32>
    %c0_15 = arith.constant 0 : index
    %c0_16 = arith.constant 0 : index
    %17 = vector.load %arg7[%c0_15, %c0_16] : memref<1x128xf32, #tpu.memory_space<vmem>>, vector<1x128xf32>
    %18 = vector.broadcast %17 : vector<1x128xf32> to vector<8x128xf32>
    %19 = arith.addf %16, %18 : vector<8x128xf32>
    %c0_17 = arith.constant 0 : index
    %c0_18 = arith.constant 0 : index
    %20 = vector.load %arg8[%c0_17, %c0_18] : memref<8x128xf32, #tpu.memory_space<vmem>>, vector<8x128xf32>
    tpu.vector_store %arg8[%c0_17, %c0_18], %19 {strides = array<i32>} : memref<8x128xf32, #tpu.memory_space<vmem>>, vector<8x128xf32>,
    return
  }
  func.func @transform_0(%arg0: i32) -> (i32, i32) {
    %c0_i32 = arith.constant 0 : i32
    %c0_i32_0 = arith.constant 0 : i32
    return %arg0, %c0_i32 : i32, i32
  }
  func.func @transform_1(%arg0: i32) -> (i32, i32) {
    %c0_i32 = arith.constant 0 : i32
    %c0_i32_0 = arith.constant 0 : i32
    %c0_i32_1 = arith.constant 0 : i32
    return %c0_i32, %c0_i32_0 : i32, i32
  }
  func.func @transform_2(%arg0: i32) -> (i32, i32) {
    %c0_i32 = arith.constant 0 : i32
    %c0_i32_0 = arith.constant 0 : i32
    %c0_i32_1 = arith.constant 0 : i32
    return %c0_i32, %c0_i32_0 : i32, i32
  }
  func.func @transform_3(%arg0: i32) -> (i32, i32) {
    %c0_i32 = arith.constant 0 : i32
    %c0_i32_0 = arith.constant 0 : i32
    %c0_i32_1 = arith.constant 0 : i32
    return %c0_i32, %c0_i32_0 : i32, i32
  }
  func.func @transform_4(%arg0: i32) -> (i32, i32) {
    %c0_i32 = arith.constant 0 : i32
    %c0_i32_0 = arith.constant 0 : i32
    %c0_i32_1 = arith.constant 0 : i32
    return %c0_i32, %c0_i32_0 : i32, i32
  }
  func.func @transform_5(%arg0: i32) -> (i32, i32) {
    %c0_i32 = arith.constant 0 : i32
    %c0_i32_0 = arith.constant 0 : i32
    %c0_i32_1 = arith.constant 0 : i32
    return %c0_i32, %c0_i32_0 : i32, i32
  }
  func.func @transform_6(%arg0: i32) -> (i32, i32) {
    %c0_i32 = arith.constant 0 : i32
    %c0_i32_0 = arith.constant 0 : i32
    %c0_i32_1 = arith.constant 0 : i32
    return %c0_i32, %c0_i32_0 : i32, i32
  }
  func.func @transform_7(%arg0: i32) -> (i32, i32) {
    %c0_i32 = arith.constant 0 : i32
    %c0_i32_0 = arith.constant 0 : i32
    return %arg0, %c0_i32 : i32, i32
  }
}

</mosaic_0001>

<llo_original>
// kernel: dqn_forward.1
$region0: #{dqn_forward.1}
  #allocation0 [shape = 'u32[]', space=smem, size = 0x4, offset = 0x4, fixed_abs, tag = 'smem constant byte address 0x4 - core index']
  #allocation1 [shape = 'u32[72,128]{1,0:T(1,128)}', space=vmem, size = 0x9000, scoped, tag = 'internal scratch']
  %s0 = inlined_call_operand.hbm [shape: f32[8,100], index: 0, kind: input, shape index: {}]
  %s1 = inlined_call_operand.hbm [shape: f32[100,256], index: 1, kind: input, shape index: {}]
  %s2 = inlined_call_operand.hbm [shape: f32[1,256], index: 2, kind: input, shape index: {}]
  %s3 = inlined_call_operand.hbm [shape: f32[256,256], index: 3, kind: input, shape index: {}]
  %s4 = inlined_call_operand.hbm [shape: f32[1,256], index: 4, kind: input, shape index: {}]
  %s5 = inlined_call_operand.hbm [shape: f32[256,128], index: 5, kind: input, shape index: {}]
  %s6 = inlined_call_operand.vmem [shape: f32[1,128], index: 6, kind: input, shape index: {}]
  %s7 = inlined_call_operand.hbm [shape: f32[8,128], index: 7, kind: output, shape index: {}]
  %s8 = sld [smem:[#allocation0]]
  $region62: #{dqn_forward.1} parent=0
    _
  %s10 = ssub.s32 1, %s8
  %s11 = scalar_select 0, %s10, %s8
  $region1: #{dqn_forward.1} parent=0
    #allocation2 [shape = 'u8[4096]{0}', space=vmem, size = 0x1000, scoped, tag = 'input window, operand 0, single buffered']
    #allocation3 [shape = 's32[1]{0}', space=sflag, size = 0x4, scoped, tag = 'scoped memory for dqn_forward.1']
    #allocation4 [shape = 's32[1]{0}', space=sflag, size = 0x4, scoped, tag = 'scoped memory for dqn_forward.1']
    #allocation5 [shape = 'u8[106496]{0}', space=vmem, size = 0x1a000, scoped, tag = 'input window, operand 1, single buffered']
    #allocation6 [shape = 's32[1]{0}', space=sflag, size = 0x4, scoped, tag = 'scoped memory for dqn_forward.1']
    #allocation7 [shape = 'u8[1024]{0}', space=vmem, size = 0x400, scoped, tag = 'input window, operand 2, single buffered']
    #allocation8 [shape = 'u8[262144]{0}', space=vmem, size = 0x40000, scoped, tag = 'input window, operand 3, single buffered']
    #allocation9 [shape = 's32[1]{0}', space=sflag, size = 0x4, scoped, tag = 'scoped memory for dqn_forward.1']
    #allocation10 [shape = 'u8[1024]{0}', space=vmem, size = 0x400, scoped, tag = 'input window, operand 4, single buffered']
    #allocation11 [shape = 'u8[131072]{0}', space=vmem, size = 0x20000, scoped, tag = 'input window, operand 5, single buffered']
    #allocation12 [shape = 's32[1]{0}', space=sflag, size = 0x4, scoped, tag = 'scoped memory for dqn_forward.1']
    #allocation13 [shape = 'u8[4096]{0}', space=vmem, size = 0x1000, scoped, tag = 'output window, operand 0, single buffered']
    %12 = vsyncpa [#allocation3], 0
    %13 = vsyncpa [#allocation6], 0
    %14 = vsyncpa [#allocation9], 0
    %15 = vsyncpa [#allocation12], 0
    %16 = vsyncpa [#allocation4], 0
    // Predicated region
    $region2: #{dqn_forward.1} parent=1 // pred_check
      _
    $region3: #{dqn_forward.1} parent=1 // pred_check_branch
      %18 = sbr.rel (0) target = $region5
    $region4: #{dqn_forward.1} parent=1 // pred_region
      %20 = vsyncadd [#allocation3], 0
      %s22 = sshll.u32 %s0, 4
      %s23 = int_to_ptr.hbm [resolvable:$true] %s22
      %s24 = sshll.u32 [#allocation2], 4
      %s25 = int_to_ptr.vmem [resolvable:$true] %s24
      %27 = dma.hbm_to_vmem [thread:$0]  %s23, 128, %s25, [#allocation3]
    $region5: #{dqn_forward.1} parent=1 // pred_fallthru
      _
    // Predicated region
    $region6: #{dqn_forward.1} parent=1 // pred_check
      _
    $region7: #{dqn_forward.1} parent=1 // pred_check_branch
      %29 = sbr.rel (0) target = $region9
    $region8: #{dqn_forward.1} parent=1 // pred_region
      %31 = vsyncadd [#allocation6], 0
      %s32 = sshll.u32 %s1, 4
      %s33 = int_to_ptr.hbm [resolvable:$true] %s32
      %s34 = sshll.u32 [#allocation5], 4
      %s35 = int_to_ptr.vmem [resolvable:$true] %s34
      %40 = dma.hbm_to_vmem [thread:$0]  %s33, 3328, %s35, [#allocation6], 256, 256, 16
    $region9: #{dqn_forward.1} parent=1 // pred_fallthru
      _
    // Predicated region
    $region10: #{dqn_forward.1} parent=1 // pred_check
      _
    $region11: #{dqn_forward.1} parent=1 // pred_check_branch
      %42 = sbr.rel (0) target = $region13
    $region12: #{dqn_forward.1} parent=1 // pred_region
      %44 = vsyncadd [#allocation6], 0
      %s46 = sshll.u32 %s2, 4
      %s47 = int_to_ptr.hbm [resolvable:$true] %s46
      %s48 = sshll.u32 [#allocation7], 4
      %s49 = int_to_ptr.vmem [resolvable:$true] %s48
      %51 = dma.hbm_to_vmem [thread:$0]  %s47, 32, %s49, [#allocation6]
    $region13: #{dqn_forward.1} parent=1 // pred_fallthru
      _
    // Predicated region
    $region14: #{dqn_forward.1} parent=1 // pred_check
      _
    $region15: #{dqn_forward.1} parent=1 // pred_check_branch
      %53 = sbr.rel (0) target = $region17
    $region16: #{dqn_forward.1} parent=1 // pred_region
      %55 = vsyncadd [#allocation9], 0
      %s56 = sshll.u32 %s3, 4
      %s57 = int_to_ptr.hbm [resolvable:$true] %s56
      %s58 = sshll.u32 [#allocation8], 4
      %s59 = int_to_ptr.vmem [resolvable:$true] %s58
      %64 = dma.hbm_to_vmem [thread:$0]  %s57, 8192, %s59, [#allocation9], 256, 256, 16
    $region17: #{dqn_forward.1} parent=1 // pred_fallthru
      _
    // Predicated region
    $region18: #{dqn_forward.1} parent=1 // pred_check
      _
    $region19: #{dqn_forward.1} parent=1 // pred_check_branch
      %66 = sbr.rel (0) target = $region21
    $region20: #{dqn_forward.1} parent=1 // pred_region
      %68 = vsyncadd [#allocation9], 0
      %s70 = sshll.u32 %s4, 4
      %s71 = int_to_ptr.hbm [resolvable:$true] %s70
      %s72 = sshll.u32 [#allocation10], 4
      %s73 = int_to_ptr.vmem [resolvable:$true] %s72
      %75 = dma.hbm_to_vmem [thread:$0]  %s71, 32, %s73, [#allocation9]
    $region21: #{dqn_forward.1} parent=1 // pred_fallthru
      _
    // Predicated region
    $region22: #{dqn_forward.1} parent=1 // pred_check
      _
    $region23: #{dqn_forward.1} parent=1 // pred_check_branch
      %77 = sbr.rel (0) target = $region25
    $region24: #{dqn_forward.1} parent=1 // pred_region
      %79 = vsyncadd [#allocation12], 0
      %s80 = sshll.u32 %s5, 4
      %s81 = int_to_ptr.hbm [resolvable:$true] %s80
      %s82 = sshll.u32 [#allocation11], 4
      %s83 = int_to_ptr.vmem [resolvable:$true] %s82
      %88 = dma.hbm_to_vmem [thread:$0]  %s81, 4096, %s83, [#allocation12], 128, 128, 8
    $region25: #{dqn_forward.1} parent=1 // pred_fallthru
      _
    // Predicated region
    $region26: #{dqn_forward.1} parent=1 // pred_check
      _
    $region27: #{dqn_forward.1} parent=1 // pred_check_branch
      %90 = sbr.rel (0) target = $region29
    $region28: #{dqn_forward.1} parent=1 // pred_region
      _
    $region29: #{dqn_forward.1} parent=1 // pred_fallthru
      _
    // Predicated region
    $region30: #{dqn_forward.1} parent=1 // pred_check
      _
    $region31: #{dqn_forward.1} parent=1 // pred_check_branch
      %92 = sbr.rel (0) target = $region33
    $region32: #{dqn_forward.1} parent=1 // pred_region
      %94 = dma.done [#allocation3], 128
    $region33: #{dqn_forward.1} parent=1 // pred_fallthru
      _
    // Predicated region
    $region34: #{dqn_forward.1} parent=1 // pred_check
      _
    $region35: #{dqn_forward.1} parent=1 // pred_check_branch
      %96 = sbr.rel (0) target = $region37
    $region36: #{dqn_forward.1} parent=1 // pred_region
      %98 = dma.done [#allocation6], 3328
    $region37: #{dqn_forward.1} parent=1 // pred_fallthru
      _
    // Predicated region
    $region38: #{dqn_forward.1} parent=1 // pred_check
      _
    $region39: #{dqn_forward.1} parent=1 // pred_check_branch
      %100 = sbr.rel (0) target = $region41
    $region40: #{dqn_forward.1} parent=1 // pred_region
      %102 = dma.done [#allocation6], 32
    $region41: #{dqn_forward.1} parent=1 // pred_fallthru
      _
    // Predicated region
    $region42: #{dqn_forward.1} parent=1 // pred_check
      _
    $region43: #{dqn_forward.1} parent=1 // pred_check_branch
      %104 = sbr.rel (0) target = $region45
    $region44: #{dqn_forward.1} parent=1 // pred_region
      %106 = dma.done [#allocation9], 8192
    $region45: #{dqn_forward.1} parent=1 // pred_fallthru
      _
    // Predicated region
    $region46: #{dqn_forward.1} parent=1 // pred_check
      _
    $region47: #{dqn_forward.1} parent=1 // pred_check_branch
      %108 = sbr.rel (0) target = $region49
    $region48: #{dqn_forward.1} parent=1 // pred_region
      %110 = dma.done [#allocation9], 32
    $region49: #{dqn_forward.1} parent=1 // pred_fallthru
      _
    // Predicated region
    $region50: #{dqn_forward.1} parent=1 // pred_check
      _
    $region51: #{dqn_forward.1} parent=1 // pred_check_branch
      %112 = sbr.rel (0) target = $region53
    $region52: #{dqn_forward.1} parent=1 // pred_region
      %114 = dma.done [#allocation12], 4096
    $region53: #{dqn_forward.1} parent=1 // pred_fallthru
      _
    %v115 = vld [vmem:[#allocation2] sm:$0xff]
    %v116 = vld [vmem:[#allocation5] sm:$0xff]
    %v117 = vld [vmem:[#allocation5 + $0x8] sm:$0xff]
    %v118 = vld [vmem:[#allocation5 + $0x10] sm:$0xff]
    %v119 = vld [vmem:[#allocation5 + $0x18] sm:$0xff]
    %v120 = vld [vmem:[#allocation5 + $0x20] sm:$0xff]
    %v121 = vld [vmem:[#allocation5 + $0x28] sm:$0xff]
    %v122 = vld [vmem:[#allocation5 + $0x30] sm:$0xff]
    %v123 = vld [vmem:[#allocation5 + $0x38] sm:$0xff]
    %v124 = vld [vmem:[#allocation5 + $0x40] sm:$0xff]
    %v125 = vld [vmem:[#allocation5 + $0x48] sm:$0xff]
    %v126 = vld [vmem:[#allocation5 + $0x50] sm:$0xff]
    %v127 = vld [vmem:[#allocation5 + $0x58] sm:$0xff]
    %v128 = vld [vmem:[#allocation5 + $0x60] sm:$0xff]
    %v129 = vld [vmem:[#allocation5 + $0x68] sm:$0xff]
    %v130 = vld [vmem:[#allocation5 + $0x70] sm:$0xff]
    %v131 = vld [vmem:[#allocation5 + $0x78] sm:$0xff]
    %v132 = vld [vmem:[#allocation5 + $0x80] sm:$0xff]
    %v133 = vld [vmem:[#allocation5 + $0x88] sm:$0xff]
    %v134 = vld [vmem:[#allocation5 + $0x90] sm:$0xff]
    %v135 = vld [vmem:[#allocation5 + $0x98] sm:$0xff]
    %v136 = vld [vmem:[#allocation5 + $0xa0] sm:$0xff]
    %v137 = vld [vmem:[#allocation5 + $0xa8] sm:$0xff]
    %v138 = vld [vmem:[#allocation5 + $0xb0] sm:$0xff]
    %v139 = vld [vmem:[#allocation5 + $0xb8] sm:$0xff]
    %v140 = vld [vmem:[#allocation5 + $0xc0] sm:$0xf]
    %v141 = vld [vmem:[#allocation5 + $0xc8] sm:$0xf]
    %v142 = vld [vmem:[#allocation7] sm:$0x3]
    %v144 = vperm.slane %v142, 0
    %v145 = vperm.slane %v142, 1
    %vm148 = vcmask 818176
    %v150 = vsel %vm148, %v115, 0
    %vm152 = vcmask 1043456
    %v154 = vsel %vm152, %v140, 0
    %v157 = vsel %vm152, %v141, 0
    %159 = vmatpush.msra.mxu0 0.0
    %160 = vmatpush.msra.mxu0 0.0
    %161 = vmatpush.msra.mxu0 0.0
    %162 = vmatpush.msra.mxu0 %v154
    %163 = vmatpush.msra.mxu0 %v138
    %164 = vmatpush.msra.mxu0 %v136
    %165 = vmatpush.msra.mxu0 %v134
    %166 = vmatpush.msra.mxu0 %v132
    %167 = vmatpush.msra.mxu0 %v130
    %168 = vmatpush.msra.mxu0 %v128
    %169 = vmatpush.msra.mxu0 %v126
    %170 = vmatpush.msra.mxu0 %v124
    %171 = vmatpush.msra.mxu0 %v122
    %172 = vmatpush.msra.mxu0 %v120
    %173 = vmatpush.msra.mxu0 %v118
    %174 = vmatpush.msra.mxu0 %v116
    %175 = vmatmul.f32.gmra.mxu0 %v150
    %v176 = vpop.f32.mrf.mxu0
    %v177 = vadd.f32 %v144, %v176
    %178 = vdwg.mxu0
    %179 = vmatpush.msra.mxu0 0.0
    %180 = vmatpush.msra.mxu0 0.0
    %181 = vmatpush.msra.mxu0 0.0
    %182 = vmatpush.msra.mxu0 %v157
    %183 = vmatpush.msra.mxu0 %v139
    %184 = vmatpush.msra.mxu0 %v137
    %185 = vmatpush.msra.mxu0 %v135
    %186 = vmatpush.msra.mxu0 %v133
    %187 = vmatpush.msra.mxu0 %v131
    %188 = vmatpush.msra.mxu0 %v129
    %189 = vmatpush.msra.mxu0 %v127
    %190 = vmatpush.msra.mxu0 %v125
    %191 = vmatpush.msra.mxu0 %v123
    %192 = vmatpush.msra.mxu0 %v121
    %193 = vmatpush.msra.mxu0 %v119
    %194 = vmatpush.msra.mxu0 %v117
    %195 = vmatmul.f32.gmra.mxu0 %v150
    %v196 = vpop.f32.mrf.mxu0
    %v197 = vadd.f32 %v145, %v196
    %198 = vdwg.mxu0
    %v199 = vmax.f32 %v177, 0.0
    %v200 = vmax.f32 %v197, 0.0
    %v201 = vld [vmem:[#allocation8] sm:$0xff]
    %v202 = vld [vmem:[#allocation8 + $0x8] sm:$0xff]
    %v203 = vld [vmem:[#allocation8 + $0x10] sm:$0xff]
    %v204 = vld [vmem:[#allocation8 + $0x18] sm:$0xff]
    %v205 = vld [vmem:[#allocation8 + $0x20] sm:$0xff]
    %v206 = vld [vmem:[#allocation8 + $0x28] sm:$0xff]
    %v207 = vld [vmem:[#allocation8 + $0x30] sm:$0xff]
    %v208 = vld [vmem:[#allocation8 + $0x38] sm:$0xff]
    %v209 = vld [vmem:[#allocation8 + $0x40] sm:$0xff]
    %v210 = vld [vmem:[#allocation8 + $0x48] sm:$0xff]
    %v211 = vld [vmem:[#allocation8 + $0x50] sm:$0xff]
    %v212 = vld [vmem:[#allocation8 + $0x58] sm:$0xff]
    %v213 = vld [vmem:[#allocation8 + $0x60] sm:$0xff]
    %v214 = vld [vmem:[#allocation8 + $0x68] sm:$0xff]
    %v215 = vld [vmem:[#allocation8 + $0x70] sm:$0xff]
    %v216 = vld [vmem:[#allocation8 + $0x78] sm:$0xff]
    %v217 = vld [vmem:[#allocation8 + $0x80] sm:$0xff]
    %v218 = vld [vmem:[#allocation8 + $0x88] sm:$0xff]
    %v219 = vld [vmem:[#allocation8 + $0x90] sm:$0xff]
    %v220 = vld [vmem:[#allocation8 + $0x98] sm:$0xff]
    %v221 = vld [vmem:[#allocation8 + $0xa0] sm:$0xff]
    %v222 = vld [vmem:[#allocation8 + $0xa8] sm:$0xff]
    %v223 = vld [vmem:[#allocation8 + $0xb0] sm:$0xff]
    %v224 = vld [vmem:[#allocation8 + $0xb8] sm:$0xff]
    %v225 = vld [vmem:[#allocation8 + $0xc0] sm:$0xff]
    %v226 = vld [vmem:[#allocation8 + $0xc8] sm:$0xff]
    %v227 = vld [vmem:[#allocation8 + $0xd0] sm:$0xff]
    %v228 = vld [vmem:[#allocation8 + $0xd8] sm:$0xff]
    %v229 = vld [vmem:[#allocation8 + $0xe0] sm:$0xff]
    %v230 = vld [vmem:[#allocation8 + $0xe8] sm:$0xff]
    %v231 = vld [vmem:[#allocation8 + $0xf0] sm:$0xff]
    %v232 = vld [vmem:[#allocation8 + $0xf8] sm:$0xff]
    %v233 = vld [vmem:[#allocation8 + $0x100] sm:$0xff]
    %v234 = vld [vmem:[#allocation8 + $0x108] sm:$0xff]
    %v235 = vld [vmem:[#allocation8 + $0x110] sm:$0xff]
    %v236 = vld [vmem:[#allocation8 + $0x118] sm:$0xff]
    %v237 = vld [vmem:[#allocation8 + $0x120] sm:$0xff]
    %v238 = vld [vmem:[#allocation8 + $0x128] sm:$0xff]
    %v239 = vld [vmem:[#allocation8 + $0x130] sm:$0xff]
    %v240 = vld [vmem:[#allocation8 + $0x138] sm:$0xff]
    %v241 = vld [vmem:[#allocation8 + $0x140] sm:$0xff]
    %v242 = vld [vmem:[#allocation8 + $0x148] sm:$0xff]
    %v243 = vld [vmem:[#allocation8 + $0x150] sm:$0xff]
    %v244 = vld [vmem:[#allocation8 + $0x158] sm:$0xff]
    %v245 = vld [vmem:[#allocation8 + $0x160] sm:$0xff]
    %v246 = vld [vmem:[#allocation8 + $0x168] sm:$0xff]
    %v247 = vld [vmem:[#allocation8 + $0x170] sm:$0xff]
    %v248 = vld [vmem:[#allocation8 + $0x178] sm:$0xff]
    %v249 = vld [vmem:[#allocation8 + $0x180] sm:$0xff]
    %v250 = vld [vmem:[#allocation8 + $0x188] sm:$0xff]
    %v251 = vld [vmem:[#allocation8 + $0x190] sm:$0xff]
    %v252 = vld [vmem:[#allocation8 + $0x198] sm:$0xff]
    %v253 = vld [vmem:[#allocation8 + $0x1a0] sm:$0xff]
    %v254 = vld [vmem:[#allocation8 + $0x1a8] sm:$0xff]
    %v255 = vld [vmem:[#allocation8 + $0x1b0] sm:$0xff]
    %v256 = vld [vmem:[#allocation8 + $0x1b8] sm:$0xff]
    %v257 = vld [vmem:[#allocation8 + $0x1c0] sm:$0xff]
    %v258 = vld [vmem:[#allocation8 + $0x1c8] sm:$0xff]
    %v259 = vld [vmem:[#allocation8 + $0x1d0] sm:$0xff]
    %v260 = vld [vmem:[#allocation8 + $0x1d8] sm:$0xff]
    %v261 = vld [vmem:[#allocation8 + $0x1e0] sm:$0xff]
    %v262 = vld [vmem:[#allocation8 + $0x1e8] sm:$0xff]
    %v263 = vld [vmem:[#allocation8 + $0x1f0] sm:$0xff]
    %v264 = vld [vmem:[#allocation8 + $0x1f8] sm:$0xff]
    %v265 = vld [vmem:[#allocation10] sm:$0x3]
    %v267 = vperm.slane %v265, 0
    %v268 = vperm.slane %v265, 1
    %271 = vmatpush.msra.mxu0 %v231
    %272 = vmatpush.msra.mxu0 %v229
    %273 = vmatpush.msra.mxu0 %v227
    %274 = vmatpush.msra.mxu0 %v225
    %275 = vmatpush.msra.mxu0 %v223
    %276 = vmatpush.msra.mxu0 %v221
    %277 = vmatpush.msra.mxu0 %v219
    %278 = vmatpush.msra.mxu0 %v217
    %279 = vmatpush.msra.mxu0 %v215
    %280 = vmatpush.msra.mxu0 %v213
    %281 = vmatpush.msra.mxu0 %v211
    %282 = vmatpush.msra.mxu0 %v209
    %283 = vmatpush.msra.mxu0 %v207
    %284 = vmatpush.msra.mxu0 %v205
    %285 = vmatpush.msra.mxu0 %v203
    %286 = vmatpush.msra.mxu0 %v201
    %287 = vmatmul.f32.gmra.mxu0 %v199
    %v288 = vpop.f32.mrf.mxu0
    %v289 = vadd.f32 %v267, %v288
    %290 = vdwg.mxu0
    %291 = vmatpush.msra.mxu0 %v263
    %292 = vmatpush.msra.mxu0 %v261
    %293 = vmatpush.msra.mxu0 %v259
    %294 = vmatpush.msra.mxu0 %v257
    %295 = vmatpush.msra.mxu0 %v255
    %296 = vmatpush.msra.mxu0 %v253
    %297 = vmatpush.msra.mxu0 %v251
    %298 = vmatpush.msra.mxu0 %v249
    %299 = vmatpush.msra.mxu0 %v247
    %300 = vmatpush.msra.mxu0 %v245
    %301 = vmatpush.msra.mxu0 %v243
    %302 = vmatpush.msra.mxu0 %v241
    %303 = vmatpush.msra.mxu0 %v239
    %304 = vmatpush.msra.mxu0 %v237
    %305 = vmatpush.msra.mxu0 %v235
    %306 = vmatpush.msra.mxu0 %v233
    %307 = vmatmul.f32.gmra.mxu0 %v200
    %v308 = vpop.f32.mrf.mxu0
    %v309 = vadd.f32 %v289, %v308
    %310 = vdwg.mxu0
    %311 = vmatpush.msra.mxu0 %v232
    %312 = vmatpush.msra.mxu0 %v230
    %313 = vmatpush.msra.mxu0 %v228
    %314 = vmatpush.msra.mxu0 %v226
    %315 = vmatpush.msra.mxu0 %v224
    %316 = vmatpush.msra.mxu0 %v222
    %317 = vmatpush.msra.mxu0 %v220
    %318 = vmatpush.msra.mxu0 %v218
    %319 = vmatpush.msra.mxu0 %v216
    %320 = vmatpush.msra.mxu0 %v214
    %321 = vmatpush.msra.mxu0 %v212
    %322 = vmatpush.msra.mxu0 %v210
    %323 = vmatpush.msra.mxu0 %v208
    %324 = vmatpush.msra.mxu0 %v206
    %325 = vmatpush.msra.mxu0 %v204
    %326 = vmatpush.msra.mxu0 %v202
    %327 = vmatmul.f32.gmra.mxu0 %v199
    %v328 = vpop.f32.mrf.mxu0
    %v329 = vadd.f32 %v268, %v328
    %330 = vdwg.mxu0
    %331 = vmatpush.msra.mxu0 %v264
    %332 = vmatpush.msra.mxu0 %v262
    %333 = vmatpush.msra.mxu0 %v260
    %334 = vmatpush.msra.mxu0 %v258
    %335 = vmatpush.msra.mxu0 %v256
    %336 = vmatpush.msra.mxu0 %v254
    %337 = vmatpush.msra.mxu0 %v252
    %338 = vmatpush.msra.mxu0 %v250
    %339 = vmatpush.msra.mxu0 %v248
    %340 = vmatpush.msra.mxu0 %v246
    %341 = vmatpush.msra.mxu0 %v244
    %342 = vmatpush.msra.mxu0 %v242
    %343 = vmatpush.msra.mxu0 %v240
    %344 = vmatpush.msra.mxu0 %v238
    %345 = vmatpush.msra.mxu0 %v236
    %346 = vmatpush.msra.mxu0 %v234
    %347 = vmatmul.f32.gmra.mxu0 %v200
    %v348 = vpop.f32.mrf.mxu0
    %v349 = vadd.f32 %v329, %v348
    %350 = vdwg.mxu0
    %v351 = vmax.f32 %v309, 0.0
    %v352 = vmax.f32 %v349, 0.0
    %v353 = vld [vmem:[#allocation11] sm:$0xff]
    %v354 = vld [vmem:[#allocation11 + $0x8] sm:$0xff]
    %v355 = vld [vmem:[#allocation11 + $0x10] sm:$0xff]
    %v356 = vld [vmem:[#allocation11 + $0x18] sm:$0xff]
    %v357 = vld [vmem:[#allocation11 + $0x20] sm:$0xff]
    %v358 = vld [vmem:[#allocation11 + $0x28] sm:$0xff]
    %v359 = vld [vmem:[#allocation11 + $0x30] sm:$0xff]
    %v360 = vld [vmem:[#allocation11 + $0x38] sm:$0xff]
    %v361 = vld [vmem:[#allocation11 + $0x40] sm:$0xff]
    %v362 = vld [vmem:[#allocation11 + $0x48] sm:$0xff]
    %v363 = vld [vmem:[#allocation11 + $0x50] sm:$0xff]
    %v364 = vld [vmem:[#allocation11 + $0x58] sm:$0xff]
    %v365 = vld [vmem:[#allocation11 + $0x60] sm:$0xff]
    %v366 = vld [vmem:[#allocation11 + $0x68] sm:$0xff]
    %v367 = vld [vmem:[#allocation11 + $0x70] sm:$0xff]
    %v368 = vld [vmem:[#allocation11 + $0x78] sm:$0xff]
    %v369 = vld [vmem:[#allocation11 + $0x80] sm:$0xff]
    %v370 = vld [vmem:[#allocation11 + $0x88] sm:$0xff]
    %v371 = vld [vmem:[#allocation11 + $0x90] sm:$0xff]
    %v372 = vld [vmem:[#allocation11 + $0x98] sm:$0xff]
    %v373 = vld [vmem:[#allocation11 + $0xa0] sm:$0xff]
    %v374 = vld [vmem:[#allocation11 + $0xa8] sm:$0xff]
    %v375 = vld [vmem:[#allocation11 + $0xb0] sm:$0xff]
    %v376 = vld [vmem:[#allocation11 + $0xb8] sm:$0xff]
    %v377 = vld [vmem:[#allocation11 + $0xc0] sm:$0xff]
    %v378 = vld [vmem:[#allocation11 + $0xc8] sm:$0xff]
    %v379 = vld [vmem:[#allocation11 + $0xd0] sm:$0xff]
    %v380 = vld [vmem:[#allocation11 + $0xd8] sm:$0xff]
    %v381 = vld [vmem:[#allocation11 + $0xe0] sm:$0xff]
    %v382 = vld [vmem:[#allocation11 + $0xe8] sm:$0xff]
    %v383 = vld [vmem:[#allocation11 + $0xf0] sm:$0xff]
    %v384 = vld [vmem:[#allocation11 + $0xf8] sm:$0xff]
    %v385 = vld [vmem:[%s6] sm:$0x1]
    %v387 = vperm.slane %v385, 0
    %389 = vmatpush.msra.mxu0 %v368
    %390 = vmatpush.msra.mxu0 %v367
    %391 = vmatpush.msra.mxu0 %v366
    %392 = vmatpush.msra.mxu0 %v365
    %393 = vmatpush.msra.mxu0 %v364
    %394 = vmatpush.msra.mxu0 %v363
    %395 = vmatpush.msra.mxu0 %v362
    %396 = vmatpush.msra.mxu0 %v361
    %397 = vmatpush.msra.mxu0 %v360
    %398 = vmatpush.msra.mxu0 %v359
    %399 = vmatpush.msra.mxu0 %v358
    %400 = vmatpush.msra.mxu0 %v357
    %401 = vmatpush.msra.mxu0 %v356
    %402 = vmatpush.msra.mxu0 %v355
    %403 = vmatpush.msra.mxu0 %v354
    %404 = vmatpush.msra.mxu0 %v353
    %405 = vmatmul.f32.gmra.mxu0 %v351
    %v406 = vpop.f32.mrf.mxu0
    %v407 = vadd.f32 %v387, %v406
    %408 = vdwg.mxu0
    %409 = vmatpush.msra.mxu0 %v384
    %410 = vmatpush.msra.mxu0 %v383
    %411 = vmatpush.msra.mxu0 %v382
    %412 = vmatpush.msra.mxu0 %v381
    %413 = vmatpush.msra.mxu0 %v380
    %414 = vmatpush.msra.mxu0 %v379
    %415 = vmatpush.msra.mxu0 %v378
    %416 = vmatpush.msra.mxu0 %v377
    %417 = vmatpush.msra.mxu0 %v376
    %418 = vmatpush.msra.mxu0 %v375
    %419 = vmatpush.msra.mxu0 %v374
    %420 = vmatpush.msra.mxu0 %v373
    %421 = vmatpush.msra.mxu0 %v372
    %422 = vmatpush.msra.mxu0 %v371
    %423 = vmatpush.msra.mxu0 %v370
    %424 = vmatpush.msra.mxu0 %v369
    %425 = vmatmul.f32.gmra.mxu0 %v352
    %v426 = vpop.f32.mrf.mxu0
    %v427 = vadd.f32 %v407, %v426
    %428 = vdwg.mxu0
    %429 = vst [vmem:[#allocation13] sm:$0xff] %v427
    // Predicated region
    $region54: #{dqn_forward.1} parent=1 // pred_check
      _
    $region55: #{dqn_forward.1} parent=1 // pred_check_branch
      %431 = sbr.rel (0) target = $region57
    $region56: #{dqn_forward.1} parent=1 // pred_region
      %433 = vsyncadd [#allocation4], 0
      %s435 = sshll.u32 [#allocation13], 4
      %s436 = int_to_ptr.vmem [resolvable:$true] %s435
      %s437 = sshll.u32 %s7, 4
      %s438 = int_to_ptr.hbm [resolvable:$true] %s437
      %440 = dma.vmem_to_hbm [thread:$0]  %s436, 128, %s438, [#allocation4]
    $region57: #{dqn_forward.1} parent=1 // pred_fallthru
      _
    // Predicated region
    $region58: #{dqn_forward.1} parent=1 // pred_check
      _
    $region59: #{dqn_forward.1} parent=1 // pred_check_branch
      %442 = sbr.rel (0) target = $region61
    $region60: #{dqn_forward.1} parent=1 // pred_region
      %444 = dma.done [#allocation4], 128
    $region61: #{dqn_forward.1} parent=1 // pred_fallthru
      _
    %445 = vsyncpa [#allocation3], 1
    %446 = vsyncpa [#allocation6], 1
    %447 = vsyncpa [#allocation9], 1
    %448 = vsyncpa [#allocation12], 1
    %449 = vsyncpa [#allocation4], 1

</llo_original>
